<compile_context>
chip_gen: v5e
topology: v5e:2x2
jax: 0.10.0
libtpu: 0.0.40
codegen_flags: <defaults>
</compile_context>

<pallas_src>
import functools
import math

import jax
import jax.numpy as jnp
from jax.experimental import pallas as pl
from jax.experimental.pallas import tpu as pltpu


# --------------------------------------------------------------------------
# Kernel: out = x + pe  (elementwise, PE broadcast over the batch tile)
# --------------------------------------------------------------------------
def _pe_add_kernel(x_ref, pe_ref, o_ref):
    """x_ref/o_ref: (TB, TS, D) tiles; pe_ref: (TS, D) tile in x's dtype."""
    o_ref[...] = x_ref[...] + pe_ref[...]  # broadcast over leading batch dim


# --------------------------------------------------------------------------
# PE table (exact reproduction of the PyTorch buffer rows [:S], even d_model)
# Cached per (S, D, dtype) so repeated forwards pay no exp/sin/cos.
# --------------------------------------------------------------------------
@functools.lru_cache(maxsize=64)
def _sinusoidal_pe_cached(seq_len, d_model, dtype_name):
    position = jnp.arange(seq_len, dtype=jnp.float32)[:, None]                 # [S, 1]
    div_term = jnp.exp(
        jnp.arange(0, d_model, 2, dtype=jnp.float32) * (-math.log(10000.0) / d_model)
    )                                                                          # [D//2]
    angles = position * div_term                                               # [S, D//2]
    # Interleave: even columns -> sin, odd columns -> cos (matches pe[:,0::2]/[:,1::2]).
    pe = jnp.stack([jnp.sin(angles), jnp.cos(angles)], axis=-1).reshape(seq_len, d_model)
    return jax.device_put(pe.astype(jnp.dtype(dtype_name)))                    # [S, D]


# --------------------------------------------------------------------------
# Lane-dense fold: make the last dim a multiple of 128 by folding k seq rows.
# --------------------------------------------------------------------------
def _lane_fold(S, D):
    if D % 128 == 0:
        return 1
    k = math.lcm(D, 128) // D  # smallest k with (k*D) % 128 == 0
    if k <= 128 and S % k == 0:
        return k
    # TODO(synk): for S not divisible by k, a padded copy could still make the
    # lane dim dense; fall back to full-extent D blocks instead.
    return 1


# --------------------------------------------------------------------------
# Tile selection: cdiv grid, dtype-aware sublane multiple, ~6 MiB x-blocks.
# --------------------------------------------------------------------------
def _pick_tiles(B, S, D_lane, itemsize, target_bytes=6 << 20):
    m = {1: 32, 2: 16}.get(itemsize, 8)          # sublane multiple per dtype packing
    row_bytes = max(D_lane * itemsize, 1)

    ts = max(m, (target_bytes // row_bytes) // m * m)
    if ts >= S:
        ts = S                                    # full-extent block (always legal)
        tb = max(1, min(B, target_bytes // max(ts * row_bytes, 1)))
    else:
        tb = 1

    # Megacore (v7x): large inputs should yield >= 2 grid blocks so both TCs get work.
    if (B * S * row_bytes) >= (4 << 20) and pl.cdiv(S, ts) * pl.cdiv(B, tb) < 2:
        if tb > 1:
            tb = (tb + 1) // 2
        elif S >= 2 * m:
            ts = max(m, ((ts // 2) // m) * m)
    return tb, ts


# --------------------------------------------------------------------------
# Wrapper
# --------------------------------------------------------------------------
def positional_encoding_forward(x):
    """Adds sinusoidal positional encoding to x of shape [B, S, D].

    Matches PositionalEncoding.forward (including the _extend_pe path): rows [:S]
    of the buffer are exactly the sinusoidal table for even D.
    """
    B, S, D = x.shape
    if D % 2 != 0:
        raise ValueError("d_model must be even (same assumption as the PyTorch buffer).")

    dtype = x.dtype
    itemsize = jnp.dtype(dtype).itemsize
    pe = _sinusoidal_pe_cached(S, D, jnp.dtype(dtype).name)   # [S, D], x.dtype, cached

    # Lane-dense folding for small / non-128-multiple D (pure reshape, exact).
    k = _lane_fold(S, D)
    S_eff, D_lane = S // k, k * D
    x_in = x.reshape(B, S_eff, D_lane) if k > 1 else x
    pe_in = pe.reshape(S_eff, D_lane) if k > 1 else pe

    tb, ts = _pick_tiles(B, S_eff, D_lane, itemsize)
    # Sequence axis OUTER, batch axis INNER: the PE block index is constant across
    # the inner batch loop, so the PE tile stays VMEM-resident (no re-fetch).
    grid = (pl.cdiv(S_eff, ts), pl.cdiv(B, tb))

    # Explicit VMEM budget: double-buffered x + out + pe blocks, capped v7x-safe.
    x_block_bytes = tb * ts * D_lane * itemsize
    pe_block_bytes = ts * D_lane * itemsize
    footprint = 2 * x_block_bytes + 2 * x_block_bytes + 2 * pe_block_bytes
    vmem_limit = int(min(max(footprint + (8 << 20), 32 << 20), 48 << 20))

    cost = pl.CostEstimate(
        flops=B * S * D,
        transcendentals=0,
        bytes_accessed=2 * B * S * D * itemsize + S * D * itemsize,
    )

    out = pl.pallas_call(
        _pe_add_kernel,
        out_shape=jax.ShapeDtypeStruct((B, S_eff, D_lane), dtype),
        grid_spec=pltpu.PrefetchScalarGridSpec(
            num_scalar_prefetch=0,
            grid=grid,
            in_specs=[
                pl.BlockSpec((tb, ts, D_lane), lambda s, b: (b, s, 0)),   # x
                pl.BlockSpec((ts, D_lane), lambda s, b: (s, 0)),          # pe (batch-invariant)
            ],
            out_specs=pl.BlockSpec((tb, ts, D_lane), lambda s, b: (b, s, 0)),
        ),
        compiler_params=pltpu.CompilerParams(
            dimension_semantics=("parallel", "parallel"),
            vmem_limit_bytes=vmem_limit,
        ),
        cost_estimate=cost,
    )(x_in, pe_in)

    return out.reshape(B, S, D) if k > 1 else out


# --------------------------------------------------------------------------
# Reference (PyTorch-buffer-style construction) + test
# --------------------------------------------------------------------------
def _reference_pe(max_len, d_model):
    position = jnp.arange(max_len, dtype=jnp.float32)[:, None]
    div_term = jnp.exp(
        jnp.arange(0, d_model, 2, dtype=jnp.float32) * (-math.log(10000.0) / d_model)
    )
    pe = jnp.zeros((max_len, d_model), dtype=jnp.float32)
    pe = pe.at[:, 0::2].set(jnp.sin(position * div_term))
    pe = pe.at[:, 1::2].set(jnp.cos(position * div_term))
    return pe[None]  # [1, max_len, d_model]


if __name__ == "__main__":
    key = jax.random.PRNGKey(0)

    # Case 1: small D (=32) exercising the lane-dense fold path.
    B, S, D = 2, 8, 32
    max_len = 64
    x = jax.random.normal(key, (B, S, D), dtype=jnp.float32)
    out = jax.block_until_ready(positional_encoding_forward(x))
    ref = x + _reference_pe(max_len, D)[:, :S, :]
    assert out.shape == (B, S, D)
    assert jnp.allclose(out, ref, atol=1e-5, rtol=1e-5), "mismatch vs reference (D=32)"

    # Case 2: lane-aligned D (=128), no fold.
    B2, S2, D2 = 2, 16, 128
    x2 = jax.random.normal(jax.random.PRNGKey(1), (B2, S2, D2), dtype=jnp.float32)
    out2 = jax.block_until_ready(positional_encoding_forward(x2))
    ref2 = x2 + _reference_pe(S2, D2)[:, :S2, :]
    assert out2.shape == (B2, S2, D2)
    assert jnp.allclose(out2, ref2, atol=1e-5, rtol=1e-5), "mismatch vs reference (D=128)"

    print("KERNEL_OK")
</pallas_src>

<mosaic_0001>
module attributes {stable_mosaic.version = 11 : i64} {
  func.func @_pe_add_kernel(%arg0: i32, %arg1: i32, %arg2: memref<2x2x128xf32, #tpu.memory_space<vmem>>, %arg3: memref<2x128xf32, #tpu.memory_space<vmem>>, %arg4: memref<2x2x128xf32, #tpu.memory_space<vmem>>) attributes {dimension_semantics = [#tpu.dimension_semantics<parallel>, #tpu.dimension_semantics<parallel>], iteration_bounds = array<i64: 1, 1>, scalar_prefetch = 0 : i64, scratch_operands = 0 : i64, tpu.core_type = #tpu.core_type<tc>, window_params = [{transform_indices = @transform_0, window_bounds = array<i64: 2, 2, 128>}, {transform_indices = @transform_1, window_bounds = array<i64: 2, 128>}, {transform_indices = @transform_2, window_bounds = array<i64: 2, 2, 128>}]} {
    %c0 = arith.constant 0 : index
    %c0_0 = arith.constant 0 : index
    %c0_1 = arith.constant 0 : index
    %0 = vector.load %arg2[%c0, %c0_0, %c0_1] : memref<2x2x128xf32, #tpu.memory_space<vmem>>, vector<2x2x128xf32>
    %c0_2 = arith.constant 0 : index
    %c0_3 = arith.constant 0 : index
    %1 = vector.load %arg3[%c0_2, %c0_3] : memref<2x128xf32, #tpu.memory_space<vmem>>, vector<2x128xf32>
    %2 = vector.shape_cast %1 : vector<2x128xf32> to vector<1x2x128xf32>
    %3 = vector.broadcast %2 : vector<1x2x128xf32> to vector<2x2x128xf32>
    %4 = arith.addf %0, %3 : vector<2x2x128xf32>
    %c0_4 = arith.constant 0 : index
    %c0_5 = arith.constant 0 : index
    %c0_6 = arith.constant 0 : index
    %5 = vector.load %arg4[%c0_4, %c0_5, %c0_6] : memref<2x2x128xf32, #tpu.memory_space<vmem>>, vector<2x2x128xf32>
    tpu.vector_store %arg4[%c0_4, %c0_5, %c0_6], %4 {strides = array<i32>} : memref<2x2x128xf32, #tpu.memory_space<vmem>>, vector<2x2x128xf32>,
    return
  }
  func.func @transform_0(%arg0: i32, %arg1: i32) -> (i32, i32, i32) {
    %c0_i32 = arith.constant 0 : i32
    %c0_i32_0 = arith.constant 0 : i32
    return %arg1, %arg0, %c0_i32 : i32, i32, i32
  }
  func.func @transform_1(%arg0: i32, %arg1: i32) -> (i32, i32) {
    %c0_i32 = arith.constant 0 : i32
    %c0_i32_0 = arith.constant 0 : i32
    return %arg0, %c0_i32 : i32, i32
  }
  func.func @transform_2(%arg0: i32, %arg1: i32) -> (i32, i32, i32) {
    %c0_i32 = arith.constant 0 : i32
    %c0_i32_0 = arith.constant 0 : i32
    return %arg1, %arg0, %c0_i32 : i32, i32, i32
  }
}

</mosaic_0001>

<llo_original>
// kernel: tpu_custom_call.1
$region0: #{tpu_custom_call.1}
  #allocation0 [shape = 'u32[]', space=smem, size = 0x4, offset = 0x4, fixed_abs, tag = 'smem constant byte address 0x4 - core index']
  #allocation1 [shape = 'u32[72,128]{1,0:T(1,128)}', space=vmem, size = 0x9000, scoped, tag = 'internal scratch']
  %s0 = inlined_call_operand.hbm [shape: f32[2,2,128], index: 0, kind: input, shape index: {}]
  %s1 = inlined_call_operand.hbm [shape: f32[2,128], index: 1, kind: input, shape index: {}]
  %s2 = inlined_call_operand.hbm [shape: f32[2,2,128], index: 2, kind: output, shape index: {}]
  %s3 = sld [smem:[#allocation0]]
  $region26: #{tpu_custom_call.1} parent=0
    _
  %s5 = ssub.s32 1, %s3
  %s6 = scalar_select 0, %s5, %s3
  $region1: #{tpu_custom_call.1} parent=0
    #allocation2 [shape = 'u8[2048]{0}', space=vmem, size = 0x800, scoped, tag = 'input window, operand 0, single buffered']
    #allocation3 [shape = 's32[1]{0}', space=sflag, size = 0x4, scoped, tag = 'scoped memory for tpu_custom_call.1']
    #allocation4 [shape = 's32[1]{0}', space=sflag, size = 0x4, scoped, tag = 'scoped memory for tpu_custom_call.1']
    #allocation5 [shape = 'u8[1024]{0}', space=vmem, size = 0x400, scoped, tag = 'input window, operand 1, single buffered']
    #allocation6 [shape = 's32[1]{0}', space=sflag, size = 0x4, scoped, tag = 'scoped memory for tpu_custom_call.1']
    #allocation7 [shape = 'u8[2048]{0}', space=vmem, size = 0x800, scoped, tag = 'output window, operand 0, single buffered']
    %7 = vsyncpa [#allocation3], 0
    %8 = vsyncpa [#allocation6], 0
    %9 = vsyncpa [#allocation4], 0
    // Predicated region
    $region2: #{tpu_custom_call.1} parent=1 // pred_check
      _
    $region3: #{tpu_custom_call.1} parent=1 // pred_check_branch
      %11 = sbr.rel (0) target = $region5
    $region4: #{tpu_custom_call.1} parent=1 // pred_region
      %13 = vsyncadd [#allocation3], 0
      %s14 = sshll.u32 %s0, 4
      %s15 = int_to_ptr.hbm [resolvable:$true] %s14
      %s16 = sshll.u32 [#allocation2], 4
      %s17 = int_to_ptr.vmem [resolvable:$true] %s16
      %22 = dma.hbm_to_vmem [thread:$0]  %s15, 64, %s17, [#allocation3], 32, 32, 2
    $region5: #{tpu_custom_call.1} parent=1 // pred_fallthru
      _
    // Predicated region
    $region6: #{tpu_custom_call.1} parent=1 // pred_check
      _
    $region7: #{tpu_custom_call.1} parent=1 // pred_check_branch
      %24 = sbr.rel (0) target = $region9
    $region8: #{tpu_custom_call.1} parent=1 // pred_region
      %26 = vsyncadd [#allocation6], 0
      %s28 = sshll.u32 %s1, 4
      %s29 = int_to_ptr.hbm [resolvable:$true] %s28
      %s30 = sshll.u32 [#allocation5], 4
      %s31 = int_to_ptr.vmem [resolvable:$true] %s30
      %33 = dma.hbm_to_vmem [thread:$0]  %s29, 32, %s31, [#allocation6]
    $region9: #{tpu_custom_call.1} parent=1 // pred_fallthru
      _
    // Predicated region
    $region10: #{tpu_custom_call.1} parent=1 // pred_check
      _
    $region11: #{tpu_custom_call.1} parent=1 // pred_check_branch
      %35 = sbr.rel (0) target = $region13
    $region12: #{tpu_custom_call.1} parent=1 // pred_region
      %37 = dma.done [#allocation3], 64
    $region13: #{tpu_custom_call.1} parent=1 // pred_fallthru
      _
    // Predicated region
    $region14: #{tpu_custom_call.1} parent=1 // pred_check
      _
    $region15: #{tpu_custom_call.1} parent=1 // pred_check_branch
      %39 = sbr.rel (0) target = $region17
    $region16: #{tpu_custom_call.1} parent=1 // pred_region
      %41 = dma.done [#allocation6], 32
    $region17: #{tpu_custom_call.1} parent=1 // pred_fallthru
      _
    %v42 = vld [vmem:[#allocation2] sm:$0x3]
    %v43 = vld [vmem:[#allocation2 + $0x2] sm:$0x3]
    %v44 = vld [vmem:[#allocation5] sm:$0x3]
    %v45 = vadd.f32 %v42, %v44
    %v46 = vadd.f32 %v43, %v44
    %47 = vst [vmem:[#allocation7] sm:$0x3] %v45
    %48 = vst [vmem:[#allocation7 + $0x2] sm:$0x3] %v46
    // Predicated region
    $region18: #{tpu_custom_call.1} parent=1 // pred_check
      _
    $region19: #{tpu_custom_call.1} parent=1 // pred_check_branch
      %50 = sbr.rel (0) target = $region21
    $region20: #{tpu_custom_call.1} parent=1 // pred_region
      %52 = vsyncadd [#allocation4], 0
      %s53 = sshll.u32 [#allocation7], 4
      %s54 = int_to_ptr.vmem [resolvable:$true] %s53
      %s55 = sshll.u32 %s2, 4
      %s56 = int_to_ptr.hbm [resolvable:$true] %s55
      %61 = dma.vmem_to_hbm [thread:$0]  %s54, 64, %s56, [#allocation4], 32, 32, 2
    $region21: #{tpu_custom_call.1} parent=1 // pred_fallthru
      _
    // Predicated region
    $region22: #{tpu_custom_call.1} parent=1 // pred_check
      _
    $region23: #{tpu_custom_call.1} parent=1 // pred_check_branch
      %63 = sbr.rel (0) target = $region25
    $region24: #{tpu_custom_call.1} parent=1 // pred_region
      %65 = dma.done [#allocation4], 64
    $region25: #{tpu_custom_call.1} parent=1 // pred_fallthru
      _
    %66 = vsyncpa [#allocation3], 1
    %67 = vsyncpa [#allocation6], 1
    %68 = vsyncpa [#allocation4], 1

</llo_original>
